<compile_context>
chip_gen: v7x
topology: tpu7x:2x2x1
jax: 0.10.0
libtpu: 0.0.40
codegen_flags: <defaults>
</compile_context>

<pallas_src>
import functools

import jax
import jax.numpy as jnp
from jax import lax
from jax.experimental import pallas as pl
from jax.experimental.pallas import tpu as pltpu

EPS = 1e-5


# ---------------------------------------------------------------------------
# Kernel
# ---------------------------------------------------------------------------
def _residual_block_kernel(x_ref, w1_ref, w2_ref, bn_ref, out_ref, *,
                           cout, lanes, H, inv_count):
    """Fused ResidualBlock forward in lane-dense (N*H, W*C) layout.

    x_ref  : (NH, W*Cin)       input rows, channel fastest on lanes
    w1_ref : (W*Cin, 4*lanes)  [conv1 kh0 | kh1 | kh2 | composed 1x1 downsample]
    w2_ref : (lanes, 3*lanes)  [conv2 kh0 | kh1 | kh2]
    bn_ref : (6, lanes)        [g1, b1, g2, b2, gd, bd], each tiled over W
    out_ref: (NH, lanes)       lane-dense output (W*Cout lanes)
    """
    f32 = jnp.float32
    nh = out_ref.shape[0]
    x = x_ref[...]
    bn = bn_ref[...]

    # h-boundary masks (VPU), built once from a 2-D iota -- no extra input.
    h_idx = lax.broadcasted_iota(jnp.int32, (nh, 1), 0) % H
    not_top = (h_idx != 0).astype(f32)       # zero the wrapped row at h == 0
    not_bot = (h_idx != H - 1).astype(f32)   # zero the wrapped row at h == H-1

    def kh_combine(t):
        # t: (NH, 3*lanes), kh taps in lane-aligned 128-lane slabs.  The kh
        # row shift commutes with the right-matmul, so it is applied after the
        # matmul as an XLU sublane roll + VPU boundary mask.
        t0 = t[:, 0 * lanes:1 * lanes]
        t1 = t[:, 1 * lanes:2 * lanes]
        t2 = t[:, 2 * lanes:3 * lanes]
        return (not_top * pltpu.roll(t0, shift=1, axis=0)           # row r-1
                + t1
                + not_bot * pltpu.roll(t2, shift=nh - 1, axis=0))   # row r+1

    def channel_total(s):
        # s: (rows, lanes).  Cyclic lane rolls by multiples of `cout` sum the
        # W positions of every channel (W = lanes / cout is a power of two).
        step = cout
        while step < lanes:
            s = s + pltpu.roll(s, shift=step, axis=1)
            step *= 2
        return s

    def batchnorm(acc, gamma_l, beta_l):
        # Training-mode BatchNorm2d: biased batch stats over (N, H, W),
        # computed fully lane-dense.  Sum and sum-of-squares share one
        # (2, lanes) vreg so the lane reduction runs once.
        # NOTE: single-pass E[x^2]-E[x]^2 variance in f32 -- fine at this
        # scale / tolerance.
        st = jnp.concatenate(
            [jnp.sum(acc, axis=0, keepdims=True),
             jnp.sum(acc * acc, axis=0, keepdims=True)], axis=0)    # (2, lanes)
        st = channel_total(st)
        mean = st[0:1, :] * inv_count
        var = st[1:2, :] * inv_count - mean * mean
        scale = gamma_l * lax.rsqrt(var + EPS)
        return acc * scale + (beta_l - mean * scale)

    # One MXU push covers conv1's three kh taps AND the composed 1x1
    # downsample (its band is concatenated on the output lanes of w1).
    t1 = jnp.dot(x, w1_ref[...], preferred_element_type=f32)        # (NH, 4*lanes)
    r1 = jnp.maximum(
        batchnorm(kh_combine(t1[:, :3 * lanes]), bn[0:1, :], bn[1:2, :]), 0.0)
    identity = batchnorm(t1[:, 3 * lanes:], bn[4:5, :], bn[5:6, :])

    # conv2 -> bn2: second (and last) MXU push.
    t2 = jnp.dot(r1, w2_ref[...], preferred_element_type=f32)       # (NH, 3*lanes)
    y2 = batchnorm(kh_combine(t2), bn[2:3, :], bn[3:4, :])

    # residual add -> relu; full-width lane-dense store.
    out_ref[...] = jnp.maximum(y2 + identity, 0.0).astype(out_ref.dtype)


# ---------------------------------------------------------------------------
# Weight-dependent preprocessing (hoisted; run once per weight update)
# ---------------------------------------------------------------------------
def _convt3x3_as_conv(wt):
    # ConvTranspose2d weight (Cin, Cout, 3, 3) with stride=1, padding=1 ==
    # cross-correlation with the spatially flipped kernel and padding 1.
    # Returns (kh, kw, Cin, Cout).
    return jnp.transpose(wt[:, :, ::-1, ::-1], (2, 3, 0, 1)).astype(jnp.float32)


def _banded_weights_cat(w, W):
    # w: (3, 3, Ci, Co) -> (W*Ci, 3*W*Co).  For each kh tap, fold the three kw
    # taps (and the w-edge zero padding) into one banded matrix mapping a whole
    # lane-dense row to a whole lane-dense row; the three kh bands are
    # concatenated along the OUTPUT lanes so one matmul produces all taps.
    bands = []
    for kh in range(3):
        b = jnp.zeros((W * w.shape[2], W * w.shape[3]), jnp.float32)
        for kw in range(3):
            sel = jnp.eye(W, k=1 - kw, dtype=jnp.float32)  # [w_in == w_out + kw - 1]
            b = b + jnp.kron(sel, w[kh, kw])
        bands.append(b)
    return jnp.concatenate(bands, axis=1)


def prepack_residual_block(wt1, wt2, wtd1, wtd2, g1, b1, g2, b2, gd, bd, *, W):
    """Builds the prepacked kernel operands.  Call once per weight update."""
    assert W & (W - 1) == 0, "lane-roll channel reduction assumes W is a power of two"

    wb1 = _banded_weights_cat(_convt3x3_as_conv(wt1), W)             # (W*Cin, 3*W*Cout)
    # The two 1x1 transposed convs compose exactly into one (Cin, Cout) map;
    # its block-diagonal band is appended to conv1's weight so conv1 and the
    # downsample share a single MXU matmul.
    wd = wtd1[:, :, 0, 0].astype(jnp.float32) @ wtd2[:, :, 0, 0].astype(jnp.float32)
    wd_band = jnp.kron(jnp.eye(W, dtype=jnp.float32), wd)            # (W*Cin, W*Cout)
    w1 = jnp.concatenate([wb1, wd_band], axis=1)                     # (W*Cin, 4*W*Cout)

    w2 = _banded_weights_cat(_convt3x3_as_conv(wt2), W)              # (W*Cout, 3*W*Cout)

    tile = lambda p: jnp.tile(p.reshape(-1).astype(jnp.float32), W)
    bn_params = jnp.stack([tile(g1), tile(b1), tile(g2), tile(b2),
                           tile(gd), tile(bd)], axis=0)              # (6, W*Cout)
    return w1, w2, bn_params


# ---------------------------------------------------------------------------
# Hot path + PyTorch-facing wrapper
# ---------------------------------------------------------------------------
@functools.partial(jax.jit, static_argnames=("H", "W", "cout"))
def residual_block_lane(x_lane, w1, w2, bn_params, *, H, W, cout):
    """Lane-dense (N*H, W*Cin) in -> (N*H, W*Cout) out.  Chained blocks should
    stay in this layout and only convert NCHW at the model boundary."""
    NH = x_lane.shape[0]
    lanes = W * cout
    kernel = functools.partial(_residual_block_kernel, cout=cout, lanes=lanes,
                               H=H, inv_count=1.0 / (NH * W))
    flops = 2 * NH * (x_lane.shape[1] * w1.shape[1] + w2.shape[0] * w2.shape[1])
    bytes_accessed = 4 * (x_lane.size + w1.size + w2.size + bn_params.size
                          + NH * lanes)
    # Single grid point: BN needs global (N,H,W) statistics and the whole
    # problem is a few hundred KiB of VMEM.
    # TODO(synk): when many independent block instances run together (e.g. on
    # v7x megacore), add a leading "parallel" grid axis over instances; one BN
    # instance cannot be split without a cross-core stats reduction.
    return pl.pallas_call(
        kernel,
        out_shape=jax.ShapeDtypeStruct((NH, lanes), jnp.float32),
        in_specs=[pl.BlockSpec(memory_space=pltpu.MemorySpace.VMEM)] * 4,
        out_specs=pl.BlockSpec(memory_space=pltpu.MemorySpace.VMEM),
        cost_estimate=pl.CostEstimate(flops=int(flops),
                                      transcendentals=3 * lanes,
                                      bytes_accessed=int(bytes_accessed)),
    )(x_lane, w1, w2, bn_params)


def residual_block(x_nchw, packed):
    """PyTorch-facing wrapper: NCHW in / NCHW out around the lane-dense path."""
    N, Cin, H, W = x_nchw.shape
    w1, w2, bn_params = packed
    cout = bn_params.shape[1] // W
    x_lane = (jnp.transpose(x_nchw, (0, 2, 3, 1))
              .reshape(N * H, W * Cin).astype(jnp.float32))
    out_lane = residual_block_lane(x_lane, w1, w2, bn_params, H=H, W=W, cout=cout)
    return jnp.transpose(out_lane.reshape(N, H, W, cout), (0, 3, 1, 2))


# ---------------------------------------------------------------------------
# Pure-JAX reference (matches PyTorch forward semantics in train() mode)
# ---------------------------------------------------------------------------
def reference_forward(x, wt1, wt2, wtd1, wtd2, g1, b1, g2, b2, gd, bd):
    def convt3x3(x, wt):
        w_conv = jnp.transpose(wt[:, :, ::-1, ::-1], (1, 0, 2, 3))  # (Cout,Cin,3,3)
        return lax.conv_general_dilated(x, w_conv, (1, 1), ((1, 1), (1, 1)),
                                        dimension_numbers=("NCHW", "OIHW", "NCHW"))

    def convt1x1(x, wt):
        w_conv = jnp.transpose(wt, (1, 0, 2, 3))
        return lax.conv_general_dilated(x, w_conv, (1, 1), ((0, 0), (0, 0)),
                                        dimension_numbers=("NCHW", "OIHW", "NCHW"))

    def bn(x, g, b):
        mean = jnp.mean(x, axis=(0, 2, 3), keepdims=True)
        var = jnp.mean((x - mean) ** 2, axis=(0, 2, 3), keepdims=True)
        return ((x - mean) * lax.rsqrt(var + EPS) * g.reshape(1, -1, 1, 1)
                + b.reshape(1, -1, 1, 1))

    identity = bn(convt1x1(convt1x1(x, wtd1), wtd2), gd, bd)
    out = jnp.maximum(bn(convt3x3(x, wt1), g1, b1), 0.0)
    out = bn(convt3x3(out, wt2), g2, b2)
    return jnp.maximum(out + identity, 0.0)


if __name__ == "__main__":
    # ResidualBlock(in_channels=4, out_channels=8, kernel_size=3, stride=1, padding=1)
    N, Cin, Cout, H, W = 2, 4, 8, 16, 16
    Cmid = Cout // 2

    key = jax.random.PRNGKey(0)
    k0, k1, k2, k3, k4 = jax.random.split(key, 5)
    x = jax.random.normal(k0, (N, Cin, H, W), jnp.float32)

    # PyTorch ConvTranspose2d weight layout: (in_channels, out_channels, kH, kW)
    wt1 = jax.random.normal(k1, (Cin, Cout, 3, 3), jnp.float32) * 0.1
    wt2 = jax.random.normal(k2, (Cout, Cout, 3, 3), jnp.float32) * 0.1
    wtd1 = jax.random.normal(k3, (Cin, Cmid, 1, 1), jnp.float32) * 0.1
    wtd2 = jax.random.normal(k4, (Cmid, Cout, 1, 1), jnp.float32) * 0.1

    # BatchNorm2d default init: gamma=1, beta=0
    # TODO(synk): running_mean/var updates (training bookkeeping) and eval-mode
    # normalization with running stats are not modeled; forward uses batch stats.
    g1 = jnp.ones((1, Cout), jnp.float32); b1 = jnp.zeros((1, Cout), jnp.float32)
    g2 = jnp.ones((1, Cout), jnp.float32); b2 = jnp.zeros((1, Cout), jnp.float32)
    gd = jnp.ones((1, Cout), jnp.float32); bd = jnp.zeros((1, Cout), jnp.float32)

    # Weight-dependent prep hoisted out of the per-call path: run once here.
    packed = jax.block_until_ready(
        prepack_residual_block(wt1, wt2, wtd1, wtd2,
                               g1, b1, g2, b2, gd, bd, W=W))

    out = jax.block_until_ready(residual_block(x, packed))
    ref = jax.block_until_ready(
        reference_forward(x, wt1, wt2, wtd1, wtd2, g1, b1, g2, b2, gd, bd))

    assert out.shape == (N, Cout, H, W), out.shape
    assert jnp.allclose(out, ref, atol=1e-3, rtol=1e-3), \
        float(jnp.max(jnp.abs(out - ref)))
    print("KERNEL_OK")
</pallas_src>

<mosaic_0001>
module attributes {stable_mosaic.version = 11 : i64} {
  func.func @_residual_block_kernel(%arg0: memref<32x64xf32, #tpu.memory_space<vmem>>, %arg1: memref<64x512xf32, #tpu.memory_space<vmem>>, %arg2: memref<128x384xf32, #tpu.memory_space<vmem>>, %arg3: memref<6x128xf32, #tpu.memory_space<vmem>>, %arg4: memref<32x128xf32, #tpu.memory_space<vmem>>) attributes {dimension_semantics = [], scalar_prefetch = 0 : i64, scratch_operands = 0 : i64, tpu.core_type = #tpu.core_type<tc>} {
    %c0 = arith.constant 0 : index
    %c0_0 = arith.constant 0 : index
    %0 = vector.load %arg0[%c0, %c0_0] : memref<32x64xf32, #tpu.memory_space<vmem>>, vector<32x64xf32>
    %c0_1 = arith.constant 0 : index
    %c0_2 = arith.constant 0 : index
    %1 = vector.load %arg3[%c0_1, %c0_2] : memref<6x128xf32, #tpu.memory_space<vmem>>, vector<6x128xf32>
    %2 = tpu.iota {dimensions = array<i32: 0>} : vector<32x1xi32>
    %c16_i32 = arith.constant 16 : i32
    %c0_i32 = arith.constant 0 : i32
    %3 = arith.cmpi eq, %c16_i32, %c0_i32 : i32
    %c1_i32 = arith.constant 1 : i32
    %4 = arith.select %3, %c1_i32, %c16_i32 : i32
    %5 = vector.broadcast %4 : i32 to vector<32x1xi32>
    %6 = arith.remsi %2, %5 : vector<32x1xi32>
    %c0_i32_3 = arith.constant 0 : i32
    %7 = vector.broadcast %c0_i32_3 : i32 to vector<32x1xi32>
    %8 = arith.cmpi ne, %6, %7 : vector<32x1xi32>
    %c0_i32_4 = arith.constant 0 : i32
    %9 = vector.broadcast %c0_i32_4 : i32 to vector<32x1xi32>
    %10 = arith.cmpi slt, %6, %9 : vector<32x1xi32>
    %c0_i32_5 = arith.constant 0 : i32
    %11 = arith.cmpi slt, %4, %c0_i32_5 : i32
    %12 = vector.broadcast %11 : i1 to vector<32x1xi1>
    %13 = vector.broadcast %12 : vector<32x1xi1> to vector<32x1xi1>
    %14 = arith.xori %10, %13 : vector<32x1xi1>
    %15 = arith.andi %14, %8 : vector<32x1xi1>
    %16 = vector.broadcast %4 : i32 to vector<32x1xi32>
    %17 = arith.addi %6, %16 : vector<32x1xi32>
    %18 = arith.select %15, %17, %6 : vector<32x1xi1>, vector<32x1xi32>
    %c0_i32_6 = arith.constant 0 : i32
    %19 = vector.broadcast %c0_i32_6 : i32 to vector<32x1xi32>
    %20 = arith.cmpi ne, %18, %19 : vector<32x1xi32>
    %21 = arith.extui %20 : vector<32x1xi1> to vector<32x1xi32>
    %22 = arith.sitofp %21 : vector<32x1xi32> to vector<32x1xf32>
    %c15_i32 = arith.constant 15 : i32
    %23 = vector.broadcast %c15_i32 : i32 to vector<32x1xi32>
    %24 = arith.cmpi ne, %18, %23 : vector<32x1xi32>
    %25 = arith.extui %24 : vector<32x1xi1> to vector<32x1xi32>
    %26 = arith.sitofp %25 : vector<32x1xi32> to vector<32x1xf32>
    %c0_7 = arith.constant 0 : index
    %c0_8 = arith.constant 0 : index
    %27 = vector.load %arg1[%c0_7, %c0_8] : memref<64x512xf32, #tpu.memory_space<vmem>>, vector<64x512xf32>
    %cst = arith.constant dense<0.000000e+00> : vector<32x512xf32>
    %28 = tpu.matmul %0, %27, %cst {dimension_numbers = #tpu.dot_dimension_numbers<[1], [0], [0], [1], [0, 0, 1, 1], [], []>} : vector<32x64xf32>, vector<64x512xf32>, vector<32x512xf32> -> vector<32x512xf32>
    %29 = vector.extract_strided_slice %28 {offsets = [0, 0], sizes = [32, 384], strides = [1, 1]} : vector<32x512xf32> to vector<32x384xf32>
    %30 = vector.extract_strided_slice %29 {offsets = [0, 0], sizes = [32, 128], strides = [1, 1]} : vector<32x384xf32> to vector<32x128xf32>
    %31 = vector.extract_strided_slice %29 {offsets = [0, 128], sizes = [32, 128], strides = [1, 1]} : vector<32x384xf32> to vector<32x128xf32>
    %32 = vector.extract_strided_slice %29 {offsets = [0, 256], sizes = [32, 128], strides = [1, 1]} : vector<32x384xf32> to vector<32x128xf32>
    %c1_i32_9 = arith.constant 1 : i32
    %33 = tpu.dynamic_rotate %30 by %c1_i32_9 dim 0 : vector<32x128xf32>, i32 -> vector<32x128xf32>
    %34 = vector.broadcast %22 : vector<32x1xf32> to vector<32x128xf32>
    %35 = arith.mulf %34, %33 : vector<32x128xf32>
    %36 = arith.addf %35, %31 : vector<32x128xf32>
    %c31_i32 = arith.constant 31 : i32
    %37 = tpu.dynamic_rotate %32 by %c31_i32 dim 0 : vector<32x128xf32>, i32 -> vector<32x128xf32>
    %38 = vector.broadcast %26 : vector<32x1xf32> to vector<32x128xf32>
    %39 = arith.mulf %38, %37 : vector<32x128xf32>
    %40 = arith.addf %36, %39 : vector<32x128xf32>
    %41 = vector.extract_strided_slice %1 {offsets = [0, 0], sizes = [1, 128], strides = [1, 1]} : vector<6x128xf32> to vector<1x128xf32>
    %42 = vector.extract_strided_slice %1 {offsets = [1, 0], sizes = [1, 128], strides = [1, 1]} : vector<6x128xf32> to vector<1x128xf32>
    %cst_10 = arith.constant dense<0.000000e+00> : vector<128xf32>
    %43 = vector.multi_reduction <add>, %40, %cst_10 [0] : vector<32x128xf32> to vector<128xf32>
    %44 = vector.shape_cast %43 : vector<128xf32> to vector<1x128xf32>
    %45 = arith.mulf %40, %40 : vector<32x128xf32>
    %cst_11 = arith.constant dense<0.000000e+00> : vector<128xf32>
    %46 = vector.multi_reduction <add>, %45, %cst_11 [0] : vector<32x128xf32> to vector<128xf32>
    %47 = vector.shape_cast %46 : vector<128xf32> to vector<1x128xf32>
    %48 = tpu.concatenate %44, %47 in 0 : vector<1x128xf32>, vector<1x128xf32> -> vector<2x128xf32>
    %c8_i32 = arith.constant 8 : i32
    %49 = tpu.dynamic_rotate %48 by %c8_i32 dim 1 : vector<2x128xf32>, i32 -> vector<2x128xf32>
    %50 = arith.addf %48, %49 : vector<2x128xf32>
    %c16_i32_12 = arith.constant 16 : i32
    %51 = tpu.dynamic_rotate %50 by %c16_i32_12 dim 1 : vector<2x128xf32>, i32 -> vector<2x128xf32>
    %52 = arith.addf %50, %51 : vector<2x128xf32>
    %c32_i32 = arith.constant 32 : i32
    %53 = tpu.dynamic_rotate %52 by %c32_i32 dim 1 : vector<2x128xf32>, i32 -> vector<2x128xf32>
    %54 = arith.addf %52, %53 : vector<2x128xf32>
    %c64_i32 = arith.constant 64 : i32
    %55 = tpu.dynamic_rotate %54 by %c64_i32 dim 1 : vector<2x128xf32>, i32 -> vector<2x128xf32>
    %56 = arith.addf %54, %55 : vector<2x128xf32>
    %57 = vector.extract_strided_slice %56 {offsets = [0, 0], sizes = [1, 128], strides = [1, 1]} : vector<2x128xf32> to vector<1x128xf32>
    %cst_13 = arith.constant 0.001953125 : f32
    %58 = vector.broadcast %cst_13 : f32 to vector<1x128xf32>
    %59 = arith.mulf %57, %58 : vector<1x128xf32>
    %60 = vector.extract_strided_slice %56 {offsets = [1, 0], sizes = [1, 128], strides = [1, 1]} : vector<2x128xf32> to vector<1x128xf32>
    %cst_14 = arith.constant 0.001953125 : f32
    %61 = vector.broadcast %cst_14 : f32 to vector<1x128xf32>
    %62 = arith.mulf %60, %61 : vector<1x128xf32>
    %63 = arith.mulf %59, %59 : vector<1x128xf32>
    %64 = arith.subf %62, %63 : vector<1x128xf32>
    %cst_15 = arith.constant 9.99999974E-6 : f32
    %65 = vector.broadcast %cst_15 : f32 to vector<1x128xf32>
    %66 = arith.addf %64, %65 : vector<1x128xf32>
    %67 = math.rsqrt %66 : vector<1x128xf32>
    %68 = arith.mulf %41, %67 : vector<1x128xf32>
    %69 = vector.broadcast %68 : vector<1x128xf32> to vector<32x128xf32>
    %70 = arith.mulf %40, %69 : vector<32x128xf32>
    %71 = arith.mulf %59, %68 : vector<1x128xf32>
    %72 = arith.subf %42, %71 : vector<1x128xf32>
    %73 = vector.broadcast %72 : vector<1x128xf32> to vector<32x128xf32>
    %74 = arith.addf %70, %73 : vector<32x128xf32>
    %cst_16 = arith.constant 0.000000e+00 : f32
    %75 = vector.broadcast %cst_16 : f32 to vector<32x128xf32>
    %76 = arith.maximumf %74, %75 : vector<32x128xf32>
    %77 = vector.extract_strided_slice %28 {offsets = [0, 384], sizes = [32, 128], strides = [1, 1]} : vector<32x512xf32> to vector<32x128xf32>
    %78 = vector.extract_strided_slice %1 {offsets = [4, 0], sizes = [1, 128], strides = [1, 1]} : vector<6x128xf32> to vector<1x128xf32>
    %79 = vector.extract_strided_slice %1 {offsets = [5, 0], sizes = [1, 128], strides = [1, 1]} : vector<6x128xf32> to vector<1x128xf32>
    %cst_17 = arith.constant dense<0.000000e+00> : vector<128xf32>
    %80 = vector.multi_reduction <add>, %77, %cst_17 [0] : vector<32x128xf32> to vector<128xf32>
    %81 = vector.shape_cast %80 : vector<128xf32> to vector<1x128xf32>
    %82 = arith.mulf %77, %77 : vector<32x128xf32>
    %cst_18 = arith.constant dense<0.000000e+00> : vector<128xf32>
    %83 = vector.multi_reduction <add>, %82, %cst_18 [0] : vector<32x128xf32> to vector<128xf32>
    %84 = vector.shape_cast %83 : vector<128xf32> to vector<1x128xf32>
    %85 = tpu.concatenate %81, %84 in 0 : vector<1x128xf32>, vector<1x128xf32> -> vector<2x128xf32>
    %c8_i32_19 = arith.constant 8 : i32
    %86 = tpu.dynamic_rotate %85 by %c8_i32_19 dim 1 : vector<2x128xf32>, i32 -> vector<2x128xf32>
    %87 = arith.addf %85, %86 : vector<2x128xf32>
    %c16_i32_20 = arith.constant 16 : i32
    %88 = tpu.dynamic_rotate %87 by %c16_i32_20 dim 1 : vector<2x128xf32>, i32 -> vector<2x128xf32>
    %89 = arith.addf %87, %88 : vector<2x128xf32>
    %c32_i32_21 = arith.constant 32 : i32
    %90 = tpu.dynamic_rotate %89 by %c32_i32_21 dim 1 : vector<2x128xf32>, i32 -> vector<2x128xf32>
    %91 = arith.addf %89, %90 : vector<2x128xf32>
    %c64_i32_22 = arith.constant 64 : i32
    %92 = tpu.dynamic_rotate %91 by %c64_i32_22 dim 1 : vector<2x128xf32>, i32 -> vector<2x128xf32>
    %93 = arith.addf %91, %92 : vector<2x128xf32>
    %94 = vector.extract_strided_slice %93 {offsets = [0, 0], sizes = [1, 128], strides = [1, 1]} : vector<2x128xf32> to vector<1x128xf32>
    %cst_23 = arith.constant 0.001953125 : f32
    %95 = vector.broadcast %cst_23 : f32 to vector<1x128xf32>
    %96 = arith.mulf %94, %95 : vector<1x128xf32>
    %97 = vector.extract_strided_slice %93 {offsets = [1, 0], sizes = [1, 128], strides = [1, 1]} : vector<2x128xf32> to vector<1x128xf32>
    %cst_24 = arith.constant 0.001953125 : f32
    %98 = vector.broadcast %cst_24 : f32 to vector<1x128xf32>
    %99 = arith.mulf %97, %98 : vector<1x128xf32>
    %100 = arith.mulf %96, %96 : vector<1x128xf32>
    %101 = arith.subf %99, %100 : vector<1x128xf32>
    %cst_25 = arith.constant 9.99999974E-6 : f32
    %102 = vector.broadcast %cst_25 : f32 to vector<1x128xf32>
    %103 = arith.addf %101, %102 : vector<1x128xf32>
    %104 = math.rsqrt %103 : vector<1x128xf32>
    %105 = arith.mulf %78, %104 : vector<1x128xf32>
    %106 = vector.broadcast %105 : vector<1x128xf32> to vector<32x128xf32>
    %107 = arith.mulf %77, %106 : vector<32x128xf32>
    %108 = arith.mulf %96, %105 : vector<1x128xf32>
    %109 = arith.subf %79, %108 : vector<1x128xf32>
    %110 = vector.broadcast %109 : vector<1x128xf32> to vector<32x128xf32>
    %111 = arith.addf %107, %110 : vector<32x128xf32>
    %c0_26 = arith.constant 0 : index
    %c0_27 = arith.constant 0 : index
    %112 = vector.load %arg2[%c0_26, %c0_27] : memref<128x384xf32, #tpu.memory_space<vmem>>, vector<128x384xf32>
    %cst_28 = arith.constant dense<0.000000e+00> : vector<32x384xf32>
    %113 = tpu.matmul %76, %112, %cst_28 {dimension_numbers = #tpu.dot_dimension_numbers<[1], [0], [0], [1], [0, 0, 1, 1], [], []>} : vector<32x128xf32>, vector<128x384xf32>, vector<32x384xf32> -> vector<32x384xf32>
    %114 = vector.extract_strided_slice %113 {offsets = [0, 0], sizes = [32, 128], strides = [1, 1]} : vector<32x384xf32> to vector<32x128xf32>
    %115 = vector.extract_strided_slice %113 {offsets = [0, 128], sizes = [32, 128], strides = [1, 1]} : vector<32x384xf32> to vector<32x128xf32>
    %116 = vector.extract_strided_slice %113 {offsets = [0, 256], sizes = [32, 128], strides = [1, 1]} : vector<32x384xf32> to vector<32x128xf32>
    %c1_i32_29 = arith.constant 1 : i32
    %117 = tpu.dynamic_rotate %114 by %c1_i32_29 dim 0 : vector<32x128xf32>, i32 -> vector<32x128xf32>
    %118 = vector.broadcast %22 : vector<32x1xf32> to vector<32x128xf32>
    %119 = arith.mulf %118, %117 : vector<32x128xf32>
    %120 = arith.addf %119, %115 : vector<32x128xf32>
    %c31_i32_30 = arith.constant 31 : i32
    %121 = tpu.dynamic_rotate %116 by %c31_i32_30 dim 0 : vector<32x128xf32>, i32 -> vector<32x128xf32>
    %122 = vector.broadcast %26 : vector<32x1xf32> to vector<32x128xf32>
    %123 = arith.mulf %122, %121 : vector<32x128xf32>
    %124 = arith.addf %120, %123 : vector<32x128xf32>
    %125 = vector.extract_strided_slice %1 {offsets = [2, 0], sizes = [1, 128], strides = [1, 1]} : vector<6x128xf32> to vector<1x128xf32>
    %126 = vector.extract_strided_slice %1 {offsets = [3, 0], sizes = [1, 128], strides = [1, 1]} : vector<6x128xf32> to vector<1x128xf32>
    %cst_31 = arith.constant dense<0.000000e+00> : vector<128xf32>
    %127 = vector.multi_reduction <add>, %124, %cst_31 [0] : vector<32x128xf32> to vector<128xf32>
    %128 = vector.shape_cast %127 : vector<128xf32> to vector<1x128xf32>
    %129 = arith.mulf %124, %124 : vector<32x128xf32>
    %cst_32 = arith.constant dense<0.000000e+00> : vector<128xf32>
    %130 = vector.multi_reduction <add>, %129, %cst_32 [0] : vector<32x128xf32> to vector<128xf32>
    %131 = vector.shape_cast %130 : vector<128xf32> to vector<1x128xf32>
    %132 = tpu.concatenate %128, %131 in 0 : vector<1x128xf32>, vector<1x128xf32> -> vector<2x128xf32>
    %c8_i32_33 = arith.constant 8 : i32
    %133 = tpu.dynamic_rotate %132 by %c8_i32_33 dim 1 : vector<2x128xf32>, i32 -> vector<2x128xf32>
    %134 = arith.addf %132, %133 : vector<2x128xf32>
    %c16_i32_34 = arith.constant 16 : i32
    %135 = tpu.dynamic_rotate %134 by %c16_i32_34 dim 1 : vector<2x128xf32>, i32 -> vector<2x128xf32>
    %136 = arith.addf %134, %135 : vector<2x128xf32>
    %c32_i32_35 = arith.constant 32 : i32
    %137 = tpu.dynamic_rotate %136 by %c32_i32_35 dim 1 : vector<2x128xf32>, i32 -> vector<2x128xf32>
    %138 = arith.addf %136, %137 : vector<2x128xf32>
    %c64_i32_36 = arith.constant 64 : i32
    %139 = tpu.dynamic_rotate %138 by %c64_i32_36 dim 1 : vector<2x128xf32>, i32 -> vector<2x128xf32>
    %140 = arith.addf %138, %139 : vector<2x128xf32>
    %141 = vector.extract_strided_slice %140 {offsets = [0, 0], sizes = [1, 128], strides = [1, 1]} : vector<2x128xf32> to vector<1x128xf32>
    %cst_37 = arith.constant 0.001953125 : f32
    %142 = vector.broadcast %cst_37 : f32 to vector<1x128xf32>
    %143 = arith.mulf %141, %142 : vector<1x128xf32>
    %144 = vector.extract_strided_slice %140 {offsets = [1, 0], sizes = [1, 128], strides = [1, 1]} : vector<2x128xf32> to vector<1x128xf32>
    %cst_38 = arith.constant 0.001953125 : f32
    %145 = vector.broadcast %cst_38 : f32 to vector<1x128xf32>
    %146 = arith.mulf %144, %145 : vector<1x128xf32>
    %147 = arith.mulf %143, %143 : vector<1x128xf32>
    %148 = arith.subf %146, %147 : vector<1x128xf32>
    %cst_39 = arith.constant 9.99999974E-6 : f32
    %149 = vector.broadcast %cst_39 : f32 to vector<1x128xf32>
    %150 = arith.addf %148, %149 : vector<1x128xf32>
    %151 = math.rsqrt %150 : vector<1x128xf32>
    %152 = arith.mulf %125, %151 : vector<1x128xf32>
    %153 = vector.broadcast %152 : vector<1x128xf32> to vector<32x128xf32>
    %154 = arith.mulf %124, %153 : vector<32x128xf32>
    %155 = arith.mulf %143, %152 : vector<1x128xf32>
    %156 = arith.subf %126, %155 : vector<1x128xf32>
    %157 = vector.broadcast %156 : vector<1x128xf32> to vector<32x128xf32>
    %158 = arith.addf %154, %157 : vector<32x128xf32>
    %159 = arith.addf %158, %111 : vector<32x128xf32>
    %cst_40 = arith.constant 0.000000e+00 : f32
    %160 = vector.broadcast %cst_40 : f32 to vector<32x128xf32>
    %161 = arith.maximumf %159, %160 : vector<32x128xf32>
    %c0_41 = arith.constant 0 : index
    %c0_42 = arith.constant 0 : index
    %162 = vector.load %arg4[%c0_41, %c0_42] : memref<32x128xf32, #tpu.memory_space<vmem>>, vector<32x128xf32>
    tpu.vector_store %arg4[%c0_41, %c0_42], %161 {strides = array<i32>} : memref<32x128xf32, #tpu.memory_space<vmem>>, vector<32x128xf32>,
    return
  }
}

</mosaic_0001>

<llo_original>
// kernel: residual_block_lane.1
$region0: #{residual_block_lane.1}
  #allocation0 [shape = 'u32[]', space=smem, size = 0x4, offset = 0x4, fixed_abs, tag = 'smem constant byte address 0x4 - core index']
  #allocation1 [shape = 'u32[144,128]{1,0:T(1,128)}', space=vmem, size = 0x12000, scoped, tag = 'internal scratch']
  %s0 = inlined_call_operand.hbm [shape: f32[32,64], index: 0, kind: input, shape index: {}]
  %s1 = inlined_call_operand.hbm [shape: f32[64,512], index: 1, kind: input, shape index: {}]
  %s2 = inlined_call_operand.hbm [shape: f32[128,384], index: 2, kind: input, shape index: {}]
  %s3 = inlined_call_operand.vmem [shape: f32[6,128], index: 3, kind: input, shape index: {}]
  %s4 = inlined_call_operand.hbm [shape: f32[32,128], index: 4, kind: output, shape index: {}]
  %s5 = sld [smem:[#allocation0]]
  $region38: #{residual_block_lane.1} parent=0
    _
  %s7 = ssub.s32 1, %s5
  %s8 = scalar_select 0, %s7, %s5
  $region1: #{residual_block_lane.1} parent=0
    #allocation2 [shape = 'u8[16384]{0}', space=vmem, size = 0x4000, scoped, tag = 'input window, operand 0, single buffered']
    #allocation3 [shape = 's32[1]{0}', space=sflag, size = 0x4, scoped, tag = 'scoped memory for residual_block_lane.1']
    #allocation4 [shape = 's32[1]{0}', space=sflag, size = 0x4, scoped, tag = 'scoped memory for residual_block_lane.1']
    #allocation5 [shape = 'u8[131072]{0}', space=vmem, size = 0x20000, scoped, tag = 'input window, operand 1, single buffered']
    #allocation6 [shape = 's32[1]{0}', space=sflag, size = 0x4, scoped, tag = 'scoped memory for residual_block_lane.1']
    #allocation7 [shape = 'u8[196608]{0}', space=vmem, size = 0x30000, scoped, tag = 'input window, operand 2, single buffered']
    #allocation8 [shape = 'u8[16384]{0}', space=vmem, size = 0x4000, scoped, tag = 'output window, operand 0, single buffered']
    %9 = vsyncpa [#allocation3], 0
    %10 = vsyncpa [#allocation6], 0
    %11 = vsyncpa [#allocation4], 0
    // Predicated region
    $region2: #{residual_block_lane.1} parent=1 // pred_check
      _
    $region3: #{residual_block_lane.1} parent=1 // pred_check_branch
      %13 = sbr.rel (0) target = $region5
    $region4: #{residual_block_lane.1} parent=1 // pred_region
      %s15 = ssub.s32 512, 512
      %16 = vsyncadd [#allocation3], %s15
      %s17 = sshll.u32 [#allocation2], 4
      %s18 = int_to_ptr.vmem [resolvable:$true] %s17
      %23 = dma.hbm_to_vmem [thread:$0]  %s0, 512, %s18, [#allocation3], 128, 128, 8
    $region5: #{residual_block_lane.1} parent=1 // pred_fallthru
      _
    // Predicated region
    $region6: #{residual_block_lane.1} parent=1 // pred_check
      _
    $region7: #{residual_block_lane.1} parent=1 // pred_check_branch
      %25 = sbr.rel (0) target = $region9
    $region8: #{residual_block_lane.1} parent=1 // pred_region
      %s27 = ssub.s32 4096, 4096
      %28 = vsyncadd [#allocation6], %s27
      %s29 = sshll.u32 [#allocation5], 4
      %s30 = int_to_ptr.vmem [resolvable:$true] %s29
      %35 = dma.hbm_to_vmem [thread:$0]  %s1, 4096, %s30, [#allocation6], 512, 512, 32
    $region9: #{residual_block_lane.1} parent=1 // pred_fallthru
      _
    // Predicated region
    $region10: #{residual_block_lane.1} parent=1 // pred_check
      _
    $region11: #{residual_block_lane.1} parent=1 // pred_check_branch
      %37 = sbr.rel (0) target = $region13
    $region12: #{residual_block_lane.1} parent=1 // pred_region
      %s39 = ssub.s32 6144, 6144
      %40 = vsyncadd [#allocation6], %s39
      %s41 = sshll.u32 [#allocation7], 4
      %s42 = int_to_ptr.vmem [resolvable:$true] %s41
      %47 = dma.hbm_to_vmem [thread:$0]  %s2, 6144, %s42, [#allocation6], 384, 384, 24
    $region13: #{residual_block_lane.1} parent=1 // pred_fallthru
      _
    // Predicated region
    $region14: #{residual_block_lane.1} parent=1 // pred_check
      _
    $region15: #{residual_block_lane.1} parent=1 // pred_check_branch
      %49 = sbr.rel (0) target = $region17
    $region16: #{residual_block_lane.1} parent=1 // pred_region
      _
    $region17: #{residual_block_lane.1} parent=1 // pred_fallthru
      _
    // Predicated region
    $region18: #{residual_block_lane.1} parent=1 // pred_check
      _
    $region19: #{residual_block_lane.1} parent=1 // pred_check_branch
      %51 = sbr.rel (0) target = $region21
    $region20: #{residual_block_lane.1} parent=1 // pred_region
      %52 = dma.done [#allocation3], 512
    $region21: #{residual_block_lane.1} parent=1 // pred_fallthru
      _
    // Predicated region
    $region22: #{residual_block_lane.1} parent=1 // pred_check
      _
    $region23: #{residual_block_lane.1} parent=1 // pred_check_branch
      %54 = sbr.rel (0) target = $region25
    $region24: #{residual_block_lane.1} parent=1 // pred_region
      %55 = dma.done [#allocation6], 4096
    $region25: #{residual_block_lane.1} parent=1 // pred_fallthru
      _
    // Predicated region
    $region26: #{residual_block_lane.1} parent=1 // pred_check
      _
    $region27: #{residual_block_lane.1} parent=1 // pred_check_branch
      %57 = sbr.rel (0) target = $region29
    $region28: #{residual_block_lane.1} parent=1 // pred_region
      %58 = dma.done [#allocation6], 6144
    $region29: #{residual_block_lane.1} parent=1 // pred_fallthru
      _
    %v59 = vld [vmem:[#allocation2] sm:$0xff]
    %v60 = vld [vmem:[#allocation2 + $0x8] sm:$0xff]
    %v61 = vld [vmem:[#allocation2 + $0x10] sm:$0xff]
    %v62 = vld [vmem:[#allocation2 + $0x18] sm:$0xff]
    %v63 = vld [vmem:[%s3] sm:$0x3f]
    %v64 = vlaneseq
    %v65 = vshrl.u32 %v64, 7
    %v66 = vadd.s32 %v65, 8
    %v67 = vadd.s32 %v65, 16
    %v68 = vadd.s32 %v65, 24
    %vm69 = vcmp.lt.s32.totalorder %v65, 0
    %v70 = vsub.s32 0, %v65
    %v71 = vsel %vm69, %v70, %v65
    %v72 = vshrl.u32 %v71, 4
    %v73 = vand.u32 %v71, 15
    %v74 = vsub.s32 0, %v73
    %v75 = vsel %vm69, %v74, %v73
    %vm76 = vcmp.lt.s32.totalorder %v66, 0
    %v77 = vsub.s32 0, %v66
    %v78 = vsel %vm76, %v77, %v66
    %v79 = vshrl.u32 %v78, 4
    %v80 = vand.u32 %v78, 15
    %v81 = vsub.s32 0, %v80
    %v82 = vsel %vm76, %v81, %v80
    %vm83 = vcmp.lt.s32.totalorder %v67, 0
    %v84 = vsub.s32 0, %v67
    %v85 = vsel %vm83, %v84, %v67
    %v86 = vshrl.u32 %v85, 4
    %v87 = vand.u32 %v85, 15
    %v88 = vsub.s32 0, %v87
    %v89 = vsel %vm83, %v88, %v87
    %vm90 = vcmp.lt.s32.totalorder %v68, 0
    %v91 = vsub.s32 0, %v68
    %v92 = vsel %vm90, %v91, %v68
    %v93 = vshrl.u32 %v92, 4
    %v94 = vand.u32 %v92, 15
    %v95 = vsub.s32 0, %v94
    %v96 = vsel %vm90, %v95, %v94
    %vm97 = vcmp.ne.s32.totalorder %v75, 0
    %vm98 = vcmp.ne.s32.totalorder %v82, 0
    %vm99 = vcmp.ne.s32.totalorder %v89, 0
    %vm100 = vcmp.ne.s32.totalorder %v96, 0
    %vm101 = vcmp.lt.s32.totalorder %v75, 0
    %vm102 = vcmp.lt.s32.totalorder %v82, 0
    %vm103 = vcmp.lt.s32.totalorder %v89, 0
    %vm104 = vcmp.lt.s32.totalorder %v96, 0
    %vm105 = vmand %vm101, %vm97
    %vm106 = vmand %vm102, %vm98
    %vm107 = vmand %vm103, %vm99
    %vm108 = vmand %vm104, %vm100
    %v109 = vadd.s32 %v75, 16
    %v110 = vadd.s32 %v82, 16
    %v111 = vadd.s32 %v89, 16
    %v112 = vadd.s32 %v96, 16
    %v113 = vsel %vm105, %v109, %v75
    %v114 = vsel %vm106, %v110, %v82
    %v115 = vsel %vm107, %v111, %v89
    %v116 = vsel %vm108, %v112, %v96
    %vm117 = vcmp.ne.s32.totalorder %v113, 0
    %vm118 = vcmp.ne.s32.totalorder %v114, 0
    %vm119 = vcmp.ne.s32.totalorder %v115, 0
    %vm120 = vcmp.ne.s32.totalorder %v116, 0
    %v121 = vsel %vm117, 1, 0
    %v122 = vsel %vm118, 1, 0
    %v123 = vsel %vm119, 1, 0
    %v124 = vsel %vm120, 1, 0
    %v125 = vcvt.s32.f32 %v121
    %v126 = vcvt.s32.f32 %v122
    %v127 = vcvt.s32.f32 %v123
    %v128 = vcvt.s32.f32 %v124
    %vm129 = vcmp.ne.s32.totalorder %v113, 15
    %vm130 = vcmp.ne.s32.totalorder %v114, 15
    %vm131 = vcmp.ne.s32.totalorder %v115, 15
    %vm132 = vcmp.ne.s32.totalorder %v116, 15
    %v133 = vsel %vm129, 1, 0
    %v134 = vsel %vm130, 1, 0
    %v135 = vsel %vm131, 1, 0
    %v136 = vsel %vm132, 1, 0
    %v137 = vcvt.s32.f32 %v133
    %v138 = vcvt.s32.f32 %v134
    %v139 = vcvt.s32.f32 %v135
    %v140 = vcvt.s32.f32 %v136
    %v141 = vld [vmem:[#allocation5] sm:$0xff]
    %v142 = vld [vmem:[#allocation5 + $0x8] sm:$0xff]
    %v143 = vld [vmem:[#allocation5 + $0x10] sm:$0xff]
    %v144 = vld [vmem:[#allocation5 + $0x18] sm:$0xff]
    %v145 = vld [vmem:[#allocation5 + $0x20] sm:$0xff]
    %v146 = vld [vmem:[#allocation5 + $0x28] sm:$0xff]
    %v147 = vld [vmem:[#allocation5 + $0x30] sm:$0xff]
    %v148 = vld [vmem:[#allocation5 + $0x38] sm:$0xff]
    %v149 = vld [vmem:[#allocation5 + $0x40] sm:$0xff]
    %v150 = vld [vmem:[#allocation5 + $0x48] sm:$0xff]
    %v151 = vld [vmem:[#allocation5 + $0x50] sm:$0xff]
    %v152 = vld [vmem:[#allocation5 + $0x58] sm:$0xff]
    %v153 = vld [vmem:[#allocation5 + $0x60] sm:$0xff]
    %v154 = vld [vmem:[#allocation5 + $0x68] sm:$0xff]
    %v155 = vld [vmem:[#allocation5 + $0x70] sm:$0xff]
    %v156 = vld [vmem:[#allocation5 + $0x78] sm:$0xff]
    %v157 = vld [vmem:[#allocation5 + $0x80] sm:$0xff]
    %v158 = vld [vmem:[#allocation5 + $0x88] sm:$0xff]
    %v159 = vld [vmem:[#allocation5 + $0x90] sm:$0xff]
    %v160 = vld [vmem:[#allocation5 + $0x98] sm:$0xff]
    %v161 = vld [vmem:[#allocation5 + $0xa0] sm:$0xff]
    %v162 = vld [vmem:[#allocation5 + $0xa8] sm:$0xff]
    %v163 = vld [vmem:[#allocation5 + $0xb0] sm:$0xff]
    %v164 = vld [vmem:[#allocation5 + $0xb8] sm:$0xff]
    %v165 = vld [vmem:[#allocation5 + $0xc0] sm:$0xff]
    %v166 = vld [vmem:[#allocation5 + $0xc8] sm:$0xff]
    %v167 = vld [vmem:[#allocation5 + $0xd0] sm:$0xff]
    %v168 = vld [vmem:[#allocation5 + $0xd8] sm:$0xff]
    %v169 = vld [vmem:[#allocation5 + $0xe0] sm:$0xff]
    %v170 = vld [vmem:[#allocation5 + $0xe8] sm:$0xff]
    %v171 = vld [vmem:[#allocation5 + $0xf0] sm:$0xff]
    %v172 = vld [vmem:[#allocation5 + $0xf8] sm:$0xff]
    %vm173 = vcmask 523264
    %v175 = vsel %vm173, %v59, 0
    %v178 = vsel %vm173, %v60, 0
    %v181 = vsel %vm173, %v61, 0
    %v184 = vsel %vm173, %v62, 0
    %186 = vmatprep.subr.mxu0 %v142
    %187 = vmatpush1.msra.mxu0 %v141
    %188 = vmatprep.subr.mxu0 %v146
    %189 = vmatpush1.msra.mxu0 %v145
    %190 = vmatprep.subr.mxu0 %v150
    %191 = vmatpush1.msra.mxu0 %v149
    %192 = vmatprep.subr.mxu0 %v154
    %193 = vmatpush1.msra.mxu0 %v153
    %194 = vmatprep.subr.mxu0 %v158
    %195 = vmatpush1.msra.mxu0 %v157
    %196 = vmatprep.subr.mxu0 %v162
    %197 = vmatpush1.msra.mxu0 %v161
    %198 = vmatprep.subr.mxu0 %v166
    %199 = vmatpush1.msra.mxu0 %v165
    %200 = vmatprep.subr.mxu0 %v170
    %201 = vmatpush1.msra.mxu0 %v169
    %202 = vmatprep.subr.mxu0 0.0
    %203 = vmatpush1.msra.mxu0 0.0
    %204 = vmatprep.subr.mxu0 0.0
    %205 = vmatpush1.msra.mxu0 0.0
    %206 = vmatprep.subr.mxu0 0.0
    %207 = vmatpush1.msra.mxu0 0.0
    %208 = vmatprep.subr.mxu0 0.0
    %209 = vmatpush1.msra.mxu0 0.0
    %210 = vmatprep.subr.mxu0 0.0
    %211 = vmatpush1.msra.mxu0 0.0
    %212 = vmatprep.subr.mxu0 0.0
    %213 = vmatpush1.msra.mxu0 0.0
    %214 = vmatprep.subr.mxu0 0.0
    %215 = vmatpush1.msra.mxu0 0.0
    %216 = vmatprep.subr.mxu0 0.0
    %217 = vmatpush1.msra.mxu0 0.0
    %218 = vmatprep.subr.mxu0 0.0
    %219 = vmatpush1.msra.mxu0 0.0
    %220 = vmatprep.subr.mxu0 0.0
    %221 = vmatpush1.msra.mxu0 0.0
    %222 = vmatprep.subr.mxu0 0.0
    %223 = vmatpush1.msra.mxu0 0.0
    %224 = vmatprep.subr.mxu0 0.0
    %225 = vmatpush1.msra.mxu0 0.0
    %226 = vmatprep.subr.mxu0 0.0
    %227 = vmatpush1.msra.mxu0 0.0
    %228 = vmatprep.subr.mxu0 0.0
    %229 = vmatpush1.msra.mxu0 0.0
    %230 = vmatprep.subr.mxu0 0.0
    %231 = vmatpush1.msra.mxu0 0.0
    %232 = vmatprep.subr.mxu0 0.0
    %233 = vmatpush1.msra.mxu0 0.0
    %234 = vmatprep.subr.mxu0 0.0
    %235 = vmatpush1.msra.mxu0 0.0
    %236 = vmatprep.subr.mxu0 0.0
    %237 = vmatpush1.msra.mxu0 0.0
    %238 = vmatprep.subr.mxu0 0.0
    %239 = vmatpush1.msra.mxu0 0.0
    %240 = vmatprep.subr.mxu0 0.0
    %241 = vmatpush1.msra.mxu0 0.0
    %242 = vmatprep.subr.mxu0 0.0
    %243 = vmatpush1.msra.mxu0 0.0
    %244 = vmatprep.subr.mxu0 0.0
    %245 = vmatpush1.msra.mxu0 0.0
    %246 = vmatprep.subr.mxu0 0.0
    %247 = vmatpush1.msra.mxu0 0.0
    %248 = vmatprep.subr.mxu0 0.0
    %249 = vmatpush1.msra.mxu0 0.0
    %250 = vmatprep.mubr.f32.mxu0 0.0
    %251 = vmatmul.mubr.f32.gmra.mrb[0].mxu0 %v175
    %v252 = vpop.f32.mrb[0].mxu0
    %v253 = vadd.f32 0.0, %v252
    %v254 = vpop.f32.mrb[0].mxu0
    %v255 = vadd.f32 0.0, %v254
    %256 = vmatprep.mubr.f32.mxu0 0.0
    %257 = vmatmul.mubr.f32.gmra.mrb[0].mxu0 %v178
    %v258 = vpop.f32.mrb[0].mxu0
    %v259 = vadd.f32 0.0, %v258
    %v260 = vpop.f32.mrb[0].mxu0
    %v261 = vadd.f32 0.0, %v260
    %262 = vmatprep.mubr.f32.mxu0 0.0
    %263 = vmatmul.mubr.f32.gmra.mrb[0].mxu0 %v181
    %v264 = vpop.f32.mrb[0].mxu0
    %v265 = vadd.f32 0.0, %v264
    %v266 = vpop.f32.mrb[0].mxu0
    %v267 = vadd.f32 0.0, %v266
    %268 = vmatprep.mubr.f32.mxu0 0.0
    %269 = vmatmul.mubr.f32.gmra.mrb[0].mxu0 %v184
    %v270 = vpop.f32.mrb[0].mxu0
    %v271 = vadd.f32 0.0, %v270
    %v272 = vpop.f32.mrb[0].mxu0
    %v273 = vadd.f32 0.0, %v272
    %274 = vdwg.mxu0
    %275 = vmatprep.subr.mxu0 %v144
    %276 = vmatpush1.msra.mxu0 %v143
    %277 = vmatprep.subr.mxu0 %v148
    %278 = vmatpush1.msra.mxu0 %v147
    %279 = vmatprep.subr.mxu0 %v152
    %280 = vmatpush1.msra.mxu0 %v151
    %281 = vmatprep.subr.mxu0 %v156
    %282 = vmatpush1.msra.mxu0 %v155
    %283 = vmatprep.subr.mxu0 %v160
    %284 = vmatpush1.msra.mxu0 %v159
    %285 = vmatprep.subr.mxu0 %v164
    %286 = vmatpush1.msra.mxu0 %v163
    %287 = vmatprep.subr.mxu0 %v168
    %288 = vmatpush1.msra.mxu0 %v167
    %289 = vmatprep.subr.mxu0 %v172
    %290 = vmatpush1.msra.mxu0 %v171
    %291 = vmatprep.subr.mxu0 0.0
    %292 = vmatpush1.msra.mxu0 0.0
    %293 = vmatprep.subr.mxu0 0.0
    %294 = vmatpush1.msra.mxu0 0.0
    %295 = vmatprep.subr.mxu0 0.0
    %296 = vmatpush1.msra.mxu0 0.0
    %297 = vmatprep.subr.mxu0 0.0
    %298 = vmatpush1.msra.mxu0 0.0
    %299 = vmatprep.subr.mxu0 0.0
    %300 = vmatpush1.msra.mxu0 0.0
    %301 = vmatprep.subr.mxu0 0.0
    %302 = vmatpush1.msra.mxu0 0.0
    %303 = vmatprep.subr.mxu0 0.0
    %304 = vmatpush1.msra.mxu0 0.0
    %305 = vmatprep.subr.mxu0 0.0
    %306 = vmatpush1.msra.mxu0 0.0
    %307 = vmatprep.subr.mxu0 0.0
    %308 = vmatpush1.msra.mxu0 0.0
    %309 = vmatprep.subr.mxu0 0.0
    %310 = vmatpush1.msra.mxu0 0.0
    %311 = vmatprep.subr.mxu0 0.0
    %312 = vmatpush1.msra.mxu0 0.0
    %313 = vmatprep.subr.mxu0 0.0
    %314 = vmatpush1.msra.mxu0 0.0
    %315 = vmatprep.subr.mxu0 0.0
    %316 = vmatpush1.msra.mxu0 0.0
    %317 = vmatprep.subr.mxu0 0.0
    %318 = vmatpush1.msra.mxu0 0.0
    %319 = vmatprep.subr.mxu0 0.0
    %320 = vmatpush1.msra.mxu0 0.0
    %321 = vmatprep.subr.mxu0 0.0
    %322 = vmatpush1.msra.mxu0 0.0
    %323 = vmatprep.subr.mxu0 0.0
    %324 = vmatpush1.msra.mxu0 0.0
    %325 = vmatprep.subr.mxu0 0.0
    %326 = vmatpush1.msra.mxu0 0.0
    %327 = vmatprep.subr.mxu0 0.0
    %328 = vmatpush1.msra.mxu0 0.0
    %329 = vmatprep.subr.mxu0 0.0
    %330 = vmatpush1.msra.mxu0 0.0
    %331 = vmatprep.subr.mxu0 0.0
    %332 = vmatpush1.msra.mxu0 0.0
    %333 = vmatprep.subr.mxu0 0.0
    %334 = vmatpush1.msra.mxu0 0.0
    %335 = vmatprep.subr.mxu0 0.0
    %336 = vmatpush1.msra.mxu0 0.0
    %337 = vmatprep.subr.mxu0 0.0
    %338 = vmatpush1.msra.mxu0 0.0
    %339 = vmatprep.mubr.f32.mxu0 0.0
    %340 = vmatmul.mubr.f32.gmra.mrb[0].mxu0 %v175
    %v341 = vpop.f32.mrb[0].mxu0
    %v342 = vadd.f32 0.0, %v341
    %v343 = vpop.f32.mrb[0].mxu0
    %v344 = vadd.f32 0.0, %v343
    %345 = vmatprep.mubr.f32.mxu0 0.0
    %346 = vmatmul.mubr.f32.gmra.mrb[0].mxu0 %v178
    %v347 = vpop.f32.mrb[0].mxu0
    %v348 = vadd.f32 0.0, %v347
    %v349 = vpop.f32.mrb[0].mxu0
    %v350 = vadd.f32 0.0, %v349
    %351 = vmatprep.mubr.f32.mxu0 0.0
    %352 = vmatmul.mubr.f32.gmra.mrb[0].mxu0 %v181
    %v353 = vpop.f32.mrb[0].mxu0
    %v354 = vadd.f32 0.0, %v353
    %v355 = vpop.f32.mrb[0].mxu0
    %v356 = vadd.f32 0.0, %v355
    %357 = vmatprep.mubr.f32.mxu0 0.0
    %358 = vmatmul.mubr.f32.gmra.mrb[0].mxu0 %v184
    %v359 = vpop.f32.mrb[0].mxu0
    %v360 = vadd.f32 0.0, %v359
    %v361 = vpop.f32.mrb[0].mxu0
    %v362 = vadd.f32 0.0, %v361
    %363 = vdwg.mxu0
    %v364 = vrot.slane %v253, 7
    %v365 = vrot.slane %v259, 7
    %v366 = vrot.slane %v265, 7
    %v367 = vrot.slane %v271, 7
    %vm368 = vcmp.lt.s32.totalorder %v65, 1
    %v369 = vsel %vm368, %v366, %v367
    %v370 = vsel %vm368, %v365, %v366
    %v371 = vsel %vm368, %v364, %v365
    %v372 = vsel %vm368, %v367, %v364
    %v373 = vmul.f32 %v125, %v372
    %v374 = vmul.f32 %v126, %v371
    %v375 = vmul.f32 %v127, %v370
    %v376 = vmul.f32 %v128, %v369
    %v377 = vadd.f32 %v373, %v255
    %v378 = vadd.f32 %v374, %v261
    %v379 = vadd.f32 %v375, %v267
    %v380 = vadd.f32 %v376, %v273
    %v381 = vrot.slane %v342, 1
    %v382 = vrot.slane %v348, 1
    %v383 = vrot.slane %v354, 1
    %v384 = vrot.slane %v360, 1
    %vm385 = vcmp.lt.s32.totalorder %v65, 7
    %v386 = vsel %vm385, %v383, %v384
    %v387 = vsel %vm385, %v382, %v383
    %v388 = vsel %vm385, %v381, %v382
    %v389 = vsel %vm385, %v384, %v381
    %v390 = vmul.f32 %v137, %v388
    %v391 = vmul.f32 %v138, %v387
    %v392 = vmul.f32 %v139, %v386
    %v393 = vmul.f32 %v140, %v389
    %v394 = vadd.f32 %v377, %v390
    %v395 = vadd.f32 %v378, %v391
    %v396 = vadd.f32 %v379, %v392
    %v397 = vadd.f32 %v380, %v393
    %v398 = vadd.f32 %v394, %v395
    %v399 = vadd.f32 %v398, %v396
    %v400 = vadd.f32 %v399, %v397
    %v401 = vrot.slane %v400, 4
    %v402 = vadd.f32 %v400, %v401
    %v403 = vrot.slane %v402, 2
    %v404 = vadd.f32 %v402, %v403
    %v405 = vrot.slane %v404, 1
    %v406 = vadd.f32 %v404, %v405
    %v407 = vmul.f32 %v394, %v394
    %v408 = vmul.f32 %v395, %v395
    %v409 = vmul.f32 %v396, %v396
    %v410 = vmul.f32 %v397, %v397
    %v411 = vadd.f32 %v407, %v408
    %v412 = vadd.f32 %v411, %v409
    %v413 = vadd.f32 %v412, %v410
    %v414 = vrot.slane %v413, 4
    %v415 = vadd.f32 %v413, %v414
    %v416 = vrot.slane %v415, 2
    %v417 = vadd.f32 %v415, %v416
    %v418 = vrot.slane %v417, 1
    %v419 = vadd.f32 %v417, %v418
    %vm420 = vcmask 1040384
    %v421 = vsel %vm420, %v406, %v419
    %422 = vrot.lane.b32.xlu0 %v421, 8
    %v423 = vpop.permute.xlu0 %422
    %v424 = vadd.f32 %v421, %v423
    %425 = vrot.lane.b32.xlu0 %v424, 16
    %v426 = vpop.permute.xlu0 %425
    %v427 = vadd.f32 %v424, %v426
    %428 = vrot.lane.b32.xlu0 %v427, 32
    %v429 = vpop.permute.xlu0 %428
    %v430 = vadd.f32 %v427, %v429
    %431 = vrot.lane.b32.xlu0 %v430, 64
    %v432 = vpop.permute.xlu0 %431
    %v433 = vadd.f32 %v430, %v432
    %v434 = vmul.f32 %v433, 0.001953125
    %v435 = vmul.f32 %v434, %v434
    %v437 = vrot.slane %v435, 7
    %v439 = vsub.f32 %v434, %v437
    %v440 = vadd.f32 %v439, 1e-05
    %v441 = vrsqrt.pop %v440
    %v443 = vrot.slane %v441, 1
    %v445 = vmul.f32 %v63, %v443
    %v446 = vlaneseq
    %v447 = vshrl.u32 %v446, 7
    %v448 = vsub.s32 0, %v447
    %v449 = vrot.slane %v445, %v448
    %v450 = vmul.f32 %v394, %v449
    %v451 = vmul.f32 %v395, %v449
    %v452 = vmul.f32 %v396, %v449
    %v453 = vmul.f32 %v397, %v449
    %v454 = vmul.f32 %v434, %v445
    %v456 = vrot.slane %v454, 7
    %v458 = vsub.f32 %v63, %v456
    %v459 = vlaneseq
    %v460 = vshrl.u32 %v459, 7
    %v461 = vsub.s32 1, %v460
    %v462 = vrot.slane %v458, %v461
    %v463 = vadd.f32 %v450, %v462
    %v464 = vadd.f32 %v451, %v462
    %v465 = vadd.f32 %v452, %v462
    %v466 = vadd.f32 %v453, %v462
    %v467 = vmax.f32 %v463, 0.0
    %v468 = vmax.f32 %v464, 0.0
    %v469 = vmax.f32 %v465, 0.0
    %v470 = vmax.f32 %v466, 0.0
    %v471 = vadd.f32 %v344, %v350
    %v472 = vadd.f32 %v471, %v356
    %v473 = vadd.f32 %v472, %v362
    %v474 = vrot.slane %v473, 4
    %v475 = vadd.f32 %v473, %v474
    %v476 = vrot.slane %v475, 2
    %v477 = vadd.f32 %v475, %v476
    %v478 = vrot.slane %v477, 1
    %v479 = vadd.f32 %v477, %v478
    %v480 = vmul.f32 %v344, %v344
    %v481 = vmul.f32 %v350, %v350
    %v482 = vmul.f32 %v356, %v356
    %v483 = vmul.f32 %v362, %v362
    %v484 = vadd.f32 %v480, %v481
    %v485 = vadd.f32 %v484, %v482
    %v486 = vadd.f32 %v485, %v483
    %v487 = vrot.slane %v486, 4
    %v488 = vadd.f32 %v486, %v487
    %v489 = vrot.slane %v488, 2
    %v490 = vadd.f32 %v488, %v489
    %v491 = vrot.slane %v490, 1
    %v492 = vadd.f32 %v490, %v491
    %v493 = vsel %vm420, %v479, %v492
    %494 = vrot.lane.b32.xlu0 %v493, 8
    %v495 = vpop.permute.xlu0 %494
    %v496 = vadd.f32 %v493, %v495
    %497 = vrot.lane.b32.xlu0 %v496, 16
    %v498 = vpop.permute.xlu0 %497
    %v499 = vadd.f32 %v496, %v498
    %500 = vrot.lane.b32.xlu0 %v499, 32
    %v501 = vpop.permute.xlu0 %500
    %v502 = vadd.f32 %v499, %v501
    %503 = vrot.lane.b32.xlu0 %v502, 64
    %v504 = vpop.permute.xlu0 %503
    %v505 = vadd.f32 %v502, %v504
    %v506 = vmul.f32 %v505, 0.001953125
    %v507 = vmul.f32 %v506, %v506
    %v509 = vrot.slane %v507, 7
    %v511 = vsub.f32 %v506, %v509
    %v512 = vadd.f32 %v511, 1e-05
    %v513 = vrsqrt.pop %v512
    %v515 = vrot.slane %v513, 5
    %v517 = vmul.f32 %v63, %v515
    %v518 = vlaneseq
    %v519 = vshrl.u32 %v518, 7
    %v520 = vsub.s32 4, %v519
    %v521 = vrot.slane %v517, %v520
    %v522 = vmul.f32 %v344, %v521
    %v523 = vmul.f32 %v350, %v521
    %v524 = vmul.f32 %v356, %v521
    %v525 = vmul.f32 %v362, %v521
    %v527 = vrot.slane %v517, 4
    %v529 = vmul.f32 %v506, %v527
    %v531 = vrot.slane %v529, 3
    %v533 = vsub.f32 %v63, %v531
    %v534 = vlaneseq
    %v535 = vshrl.u32 %v534, 7
    %v536 = vsub.s32 5, %v535
    %v537 = vrot.slane %v533, %v536
    %v538 = vadd.f32 %v522, %v537
    %v539 = vadd.f32 %v523, %v537
    %v540 = vadd.f32 %v524, %v537
    %v541 = vadd.f32 %v525, %v537
    %v542 = vld [vmem:[#allocation7] sm:$0xff]
    %v543 = vld [vmem:[#allocation7 + $0x8] sm:$0xff]
    %v544 = vld [vmem:[#allocation7 + $0x10] sm:$0xff]
    %v545 = vld [vmem:[#allocation7 + $0x18] sm:$0xff]
    %v546 = vld [vmem:[#allocation7 + $0x20] sm:$0xff]
    %v547 = vld [vmem:[#allocation7 + $0x28] sm:$0xff]
    %v548 = vld [vmem:[#allocation7 + $0x30] sm:$0xff]
    %v549 = vld [vmem:[#allocation7 + $0x38] sm:$0xff]
    %v550 = vld [vmem:[#allocation7 + $0x40] sm:$0xff]
    %v551 = vld [vmem:[#allocation7 + $0x48] sm:$0xff]
    %v552 = vld [vmem:[#allocation7 + $0x50] sm:$0xff]
    %v553 = vld [vmem:[#allocation7 + $0x58] sm:$0xff]
    %v554 = vld [vmem:[#allocation7 + $0x60] sm:$0xff]
    %v555 = vld [vmem:[#allocation7 + $0x68] sm:$0xff]
    %v556 = vld [vmem:[#allocation7 + $0x70] sm:$0xff]
    %v557 = vld [vmem:[#allocation7 + $0x78] sm:$0xff]
    %v558 = vld [vmem:[#allocation7 + $0x80] sm:$0xff]
    %v559 = vld [vmem:[#allocation7 + $0x88] sm:$0xff]
    %v560 = vld [vmem:[#allocation7 + $0x90] sm:$0xff]
    %v561 = vld [vmem:[#allocation7 + $0x98] sm:$0xff]
    %v562 = vld [vmem:[#allocation7 + $0xa0] sm:$0xff]
    %v563 = vld [vmem:[#allocation7 + $0xa8] sm:$0xff]
    %v564 = vld [vmem:[#allocation7 + $0xb0] sm:$0xff]
    %v565 = vld [vmem:[#allocation7 + $0xb8] sm:$0xff]
    %v566 = vld [vmem:[#allocation7 + $0xc0] sm:$0xff]
    %v567 = vld [vmem:[#allocation7 + $0xc8] sm:$0xff]
    %v568 = vld [vmem:[#allocation7 + $0xd0] sm:$0xff]
    %v569 = vld [vmem:[#allocation7 + $0xd8] sm:$0xff]
    %v570 = vld [vmem:[#allocation7 + $0xe0] sm:$0xff]
    %v571 = vld [vmem:[#allocation7 + $0xe8] sm:$0xff]
    %v572 = vld [vmem:[#allocation7 + $0xf0] sm:$0xff]
    %v573 = vld [vmem:[#allocation7 + $0xf8] sm:$0xff]
    %v574 = vld [vmem:[#allocation7 + $0x100] sm:$0xff]
    %v575 = vld [vmem:[#allocation7 + $0x108] sm:$0xff]
    %v576 = vld [vmem:[#allocation7 + $0x110] sm:$0xff]
    %v577 = vld [vmem:[#allocation7 + $0x118] sm:$0xff]
    %v578 = vld [vmem:[#allocation7 + $0x120] sm:$0xff]
    %v579 = vld [vmem:[#allocation7 + $0x128] sm:$0xff]
    %v580 = vld [vmem:[#allocation7 + $0x130] sm:$0xff]
    %v581 = vld [vmem:[#allocation7 + $0x138] sm:$0xff]
    %v582 = vld [vmem:[#allocation7 + $0x140] sm:$0xff]
    %v583 = vld [vmem:[#allocation7 + $0x148] sm:$0xff]
    %v584 = vld [vmem:[#allocation7 + $0x150] sm:$0xff]
    %v585 = vld [vmem:[#allocation7 + $0x158] sm:$0xff]
    %v586 = vld [vmem:[#allocation7 + $0x160] sm:$0xff]
    %v587 = vld [vmem:[#allocation7 + $0x168] sm:$0xff]
    %v588 = vld [vmem:[#allocation7 + $0x170] sm:$0xff]
    %v589 = vld [vmem:[#allocation7 + $0x178] sm:$0xff]
    %590 = vmatprep.subr.mxu0 %v543
    %591 = vmatpush1.msra.mxu0 %v542
    %592 = vmatprep.subr.mxu0 %v546
    %593 = vmatpush1.msra.mxu0 %v545
    %594 = vmatprep.subr.mxu0 %v549
    %595 = vmatpush1.msra.mxu0 %v548
    %596 = vmatprep.subr.mxu0 %v552
    %597 = vmatpush1.msra.mxu0 %v551
    %598 = vmatprep.subr.mxu0 %v555
    %599 = vmatpush1.msra.mxu0 %v554
    %600 = vmatprep.subr.mxu0 %v558
    %601 = vmatpush1.msra.mxu0 %v557
    %602 = vmatprep.subr.mxu0 %v561
    %603 = vmatpush1.msra.mxu0 %v560
    %604 = vmatprep.subr.mxu0 %v564
    %605 = vmatpush1.msra.mxu0 %v563
    %606 = vmatprep.subr.mxu0 %v567
    %607 = vmatpush1.msra.mxu0 %v566
    %608 = vmatprep.subr.mxu0 %v570
    %609 = vmatpush1.msra.mxu0 %v569
    %610 = vmatprep.subr.mxu0 %v573
    %611 = vmatpush1.msra.mxu0 %v572
    %612 = vmatprep.subr.mxu0 %v576
    %613 = vmatpush1.msra.mxu0 %v575
    %614 = vmatprep.subr.mxu0 %v579
    %615 = vmatpush1.msra.mxu0 %v578
    %616 = vmatprep.subr.mxu0 %v582
    %617 = vmatpush1.msra.mxu0 %v581
    %618 = vmatprep.subr.mxu0 %v585
    %619 = vmatpush1.msra.mxu0 %v584
    %620 = vmatprep.subr.mxu0 %v588
    %621 = vmatpush1.msra.mxu0 %v587
    %622 = vmatprep.subr.mxu0 0.0
    %623 = vmatpush1.msra.mxu0 0.0
    %624 = vmatprep.subr.mxu0 0.0
    %625 = vmatpush1.msra.mxu0 0.0
    %626 = vmatprep.subr.mxu0 0.0
    %627 = vmatpush1.msra.mxu0 0.0
    %628 = vmatprep.subr.mxu0 0.0
    %629 = vmatpush1.msra.mxu0 0.0
    %630 = vmatprep.subr.mxu0 0.0
    %631 = vmatpush1.msra.mxu0 0.0
    %632 = vmatprep.subr.mxu0 0.0
    %633 = vmatpush1.msra.mxu0 0.0
    %634 = vmatprep.subr.mxu0 0.0
    %635 = vmatpush1.msra.mxu0 0.0
    %636 = vmatprep.subr.mxu0 0.0
    %637 = vmatpush1.msra.mxu0 0.0
    %638 = vmatprep.subr.mxu0 0.0
    %639 = vmatpush1.msra.mxu0 0.0
    %640 = vmatprep.subr.mxu0 0.0
    %641 = vmatpush1.msra.mxu0 0.0
    %642 = vmatprep.subr.mxu0 0.0
    %643 = vmatpush1.msra.mxu0 0.0
    %644 = vmatprep.subr.mxu0 0.0
    %645 = vmatpush1.msra.mxu0 0.0
    %646 = vmatprep.subr.mxu0 0.0
    %647 = vmatpush1.msra.mxu0 0.0
    %648 = vmatprep.subr.mxu0 0.0
    %649 = vmatpush1.msra.mxu0 0.0
    %650 = vmatprep.subr.mxu0 0.0
    %651 = vmatpush1.msra.mxu0 0.0
    %652 = vmatprep.subr.mxu0 0.0
    %653 = vmatpush1.msra.mxu0 0.0
    %654 = vmatprep.mubr.f32.mxu0 0.0
    %655 = vmatmul.mubr.f32.gmra.mrb[0].mxu0 %v467
    %v656 = vpop.f32.mrb[0].mxu0
    %v657 = vadd.f32 0.0, %v656
    %v658 = vpop.f32.mrb[0].mxu0
    %v659 = vadd.f32 0.0, %v658
    %660 = vmatprep.mubr.f32.mxu0 0.0
    %661 = vmatmul.mubr.f32.gmra.mrb[0].mxu0 %v468
    %v662 = vpop.f32.mrb[0].mxu0
    %v663 = vadd.f32 0.0, %v662
    %v664 = vpop.f32.mrb[0].mxu0
    %v665 = vadd.f32 0.0, %v664
    %666 = vmatprep.mubr.f32.mxu0 0.0
    %667 = vmatmul.mubr.f32.gmra.mrb[0].mxu0 %v469
    %v668 = vpop.f32.mrb[0].mxu0
    %v669 = vadd.f32 0.0, %v668
    %v670 = vpop.f32.mrb[0].mxu0
    %v671 = vadd.f32 0.0, %v670
    %672 = vmatprep.mubr.f32.mxu0 0.0
    %673 = vmatmul.mubr.f32.gmra.mrb[0].mxu0 %v470
    %v674 = vpop.f32.mrb[0].mxu0
    %v675 = vadd.f32 0.0, %v674
    %v676 = vpop.f32.mrb[0].mxu0
    %v677 = vadd.f32 0.0, %v676
    %678 = vdwg.mxu0
    %679 = vmatprep.subr.mxu0 0.0
    %680 = vmatpush1.msra.mxu0 %v544
    %681 = vmatprep.subr.mxu0 0.0
    %682 = vmatpush1.msra.mxu0 %v547
    %683 = vmatprep.subr.mxu0 0.0
    %684 = vmatpush1.msra.mxu0 %v550
    %685 = vmatprep.subr.mxu0 0.0
    %686 = vmatpush1.msra.mxu0 %v553
    %687 = vmatprep.subr.mxu0 0.0
    %688 = vmatpush1.msra.mxu0 %v556
    %689 = vmatprep.subr.mxu0 0.0
    %690 = vmatpush1.msra.mxu0 %v559
    %691 = vmatprep.subr.mxu0 0.0
    %692 = vmatpush1.msra.mxu0 %v562
    %693 = vmatprep.subr.mxu0 0.0
    %694 = vmatpush1.msra.mxu0 %v565
    %695 = vmatprep.subr.mxu0 0.0
    %696 = vmatpush1.msra.mxu0 %v568
    %697 = vmatprep.subr.mxu0 0.0
    %698 = vmatpush1.msra.mxu0 %v571
    %699 = vmatprep.subr.mxu0 0.0
    %700 = vmatpush1.msra.mxu0 %v574
    %701 = vmatprep.subr.mxu0 0.0
    %702 = vmatpush1.msra.mxu0 %v577
    %703 = vmatprep.subr.mxu0 0.0
    %704 = vmatpush1.msra.mxu0 %v580
    %705 = vmatprep.subr.mxu0 0.0
    %706 = vmatpush1.msra.mxu0 %v583
    %707 = vmatprep.subr.mxu0 0.0
    %708 = vmatpush1.msra.mxu0 %v586
    %709 = vmatprep.subr.mxu0 0.0
    %710 = vmatpush1.msra.mxu0 %v589
    %711 = vmatprep.subr.mxu0 0.0
    %712 = vmatpush1.msra.mxu0 0.0
    %713 = vmatprep.subr.mxu0 0.0
    %714 = vmatpush1.msra.mxu0 0.0
    %715 = vmatprep.subr.mxu0 0.0
    %716 = vmatpush1.msra.mxu0 0.0
    %717 = vmatprep.subr.mxu0 0.0
    %718 = vmatpush1.msra.mxu0 0.0
    %719 = vmatprep.subr.mxu0 0.0
    %720 = vmatpush1.msra.mxu0 0.0
    %721 = vmatprep.subr.mxu0 0.0
    %722 = vmatpush1.msra.mxu0 0.0
    %723 = vmatprep.subr.mxu0 0.0
    %724 = vmatpush1.msra.mxu0 0.0
    %725 = vmatprep.subr.mxu0 0.0
    %726 = vmatpush1.msra.mxu0 0.0
    %727 = vmatprep.subr.mxu0 0.0
    %728 = vmatpush1.msra.mxu0 0.0
    %729 = vmatprep.subr.mxu0 0.0
    %730 = vmatpush1.msra.mxu0 0.0
    %731 = vmatprep.subr.mxu0 0.0
    %732 = vmatpush1.msra.mxu0 0.0
    %733 = vmatprep.subr.mxu0 0.0
    %734 = vmatpush1.msra.mxu0 0.0
    %735 = vmatprep.subr.mxu0 0.0
    %736 = vmatpush1.msra.mxu0 0.0
    %737 = vmatprep.subr.mxu0 0.0
    %738 = vmatpush1.msra.mxu0 0.0
    %739 = vmatprep.subr.mxu0 0.0
    %740 = vmatpush1.msra.mxu0 0.0
    %741 = vmatprep.subr.mxu0 0.0
    %742 = vmatpush1.msra.mxu0 0.0
    %743 = vmatprep.mubr.f32.mxu0 0.0
    %744 = vmatmul.mubr.f32.gmra.mrb[0].mxu0 %v467
    %v745 = vpop.f32.mrb[0].mxu0
    %v746 = vadd.f32 0.0, %v745
    %v747 = vpop.f32.mrb[0].mxu0
    %748 = vmatprep.mubr.f32.mxu0 0.0
    %749 = vmatmul.mubr.f32.gmra.mrb[0].mxu0 %v468
    %v750 = vpop.f32.mrb[0].mxu0
    %v751 = vadd.f32 0.0, %v750
    %v752 = vpop.f32.mrb[0].mxu0
    %753 = vmatprep.mubr.f32.mxu0 0.0
    %754 = vmatmul.mubr.f32.gmra.mrb[0].mxu0 %v469
    %v755 = vpop.f32.mrb[0].mxu0
    %v756 = vadd.f32 0.0, %v755
    %v757 = vpop.f32.mrb[0].mxu0
    %758 = vmatprep.mubr.f32.mxu0 0.0
    %759 = vmatmul.mubr.f32.gmra.mrb[0].mxu0 %v470
    %v760 = vpop.f32.mrb[0].mxu0
    %v761 = vadd.f32 0.0, %v760
    %v762 = vpop.f32.mrb[0].mxu0
    %763 = vdwg.mxu0
    %v764 = vrot.slane %v657, 7
    %v765 = vrot.slane %v663, 7
    %v766 = vrot.slane %v669, 7
    %v767 = vrot.slane %v675, 7
    %v768 = vsel %vm368, %v766, %v767
    %v769 = vsel %vm368, %v765, %v766
    %v770 = vsel %vm368, %v764, %v765
    %v771 = vsel %vm368, %v767, %v764
    %v772 = vmul.f32 %v125, %v771
    %v773 = vmul.f32 %v126, %v770
    %v774 = vmul.f32 %v127, %v769
    %v775 = vmul.f32 %v128, %v768
    %v776 = vadd.f32 %v772, %v659
    %v777 = vadd.f32 %v773, %v665
    %v778 = vadd.f32 %v774, %v671
    %v779 = vadd.f32 %v775, %v677
    %v780 = vrot.slane %v746, 1
    %v781 = vrot.slane %v751, 1
    %v782 = vrot.slane %v756, 1
    %v783 = vrot.slane %v761, 1
    %v784 = vsel %vm385, %v782, %v783
    %v785 = vsel %vm385, %v781, %v782
    %v786 = vsel %vm385, %v780, %v781
    %v787 = vsel %vm385, %v783, %v780
    %v788 = vmul.f32 %v137, %v786
    %v789 = vmul.f32 %v138, %v785
    %v790 = vmul.f32 %v139, %v784
    %v791 = vmul.f32 %v140, %v787
    %v792 = vadd.f32 %v776, %v788
    %v793 = vadd.f32 %v777, %v789
    %v794 = vadd.f32 %v778, %v790
    %v795 = vadd.f32 %v779, %v791
    %v796 = vadd.f32 %v792, %v793
    %v797 = vadd.f32 %v796, %v794
    %v798 = vadd.f32 %v797, %v795
    %v799 = vrot.slane %v798, 4
    %v800 = vadd.f32 %v798, %v799
    %v801 = vrot.slane %v800, 2
    %v802 = vadd.f32 %v800, %v801
    %v803 = vrot.slane %v802, 1
    %v804 = vadd.f32 %v802, %v803
    %v805 = vmul.f32 %v792, %v792
    %v806 = vmul.f32 %v793, %v793
    %v807 = vmul.f32 %v794, %v794
    %v808 = vmul.f32 %v795, %v795
    %v809 = vadd.f32 %v805, %v806
    %v810 = vadd.f32 %v809, %v807
    %v811 = vadd.f32 %v810, %v808
    %v812 = vrot.slane %v811, 4
    %v813 = vadd.f32 %v811, %v812
    %v814 = vrot.slane %v813, 2
    %v815 = vadd.f32 %v813, %v814
    %v816 = vrot.slane %v815, 1
    %v817 = vadd.f32 %v815, %v816
    %v818 = vsel %vm420, %v804, %v817
    %819 = vrot.lane.b32.xlu0 %v818, 8
    %v820 = vpop.permute.xlu0 %819
    %v821 = vadd.f32 %v818, %v820
    %822 = vrot.lane.b32.xlu0 %v821, 16
    %v823 = vpop.permute.xlu0 %822
    %v824 = vadd.f32 %v821, %v823
    %825 = vrot.lane.b32.xlu0 %v824, 32
    %v826 = vpop.permute.xlu0 %825
    %v827 = vadd.f32 %v824, %v826
    %828 = vrot.lane.b32.xlu0 %v827, 64
    %v829 = vpop.permute.xlu0 %828
    %v830 = vadd.f32 %v827, %v829
    %v831 = vmul.f32 %v830, 0.001953125
    %v832 = vmul.f32 %v831, %v831
    %v834 = vrot.slane %v832, 7
    %v836 = vsub.f32 %v831, %v834
    %v837 = vadd.f32 %v836, 1e-05
    %v838 = vrsqrt.pop %v837
    %v840 = vrot.slane %v838, 7
    %v842 = vmul.f32 %v63, %v840
    %v843 = vlaneseq
    %v844 = vshrl.u32 %v843, 7
    %v845 = vsub.s32 2, %v844
    %v846 = vrot.slane %v842, %v845
    %v847 = vmul.f32 %v792, %v846
    %v848 = vmul.f32 %v793, %v846
    %v849 = vmul.f32 %v794, %v846
    %v850 = vmul.f32 %v795, %v846
    %v852 = vrot.slane %v842, 2
    %v854 = vmul.f32 %v831, %v852
    %v856 = vrot.slane %v854, 5
    %v858 = vsub.f32 %v63, %v856
    %v859 = vlaneseq
    %v860 = vshrl.u32 %v859, 7
    %v861 = vsub.s32 3, %v860
    %v862 = vrot.slane %v858, %v861
    %v863 = vadd.f32 %v847, %v862
    %v864 = vadd.f32 %v848, %v862
    %v865 = vadd.f32 %v849, %v862
    %v866 = vadd.f32 %v850, %v862
    %v867 = vadd.f32 %v863, %v538
    %v868 = vadd.f32 %v864, %v539
    %v869 = vadd.f32 %v865, %v540
    %v870 = vadd.f32 %v866, %v541
    %v871 = vmax.f32 %v867, 0.0
    %v872 = vmax.f32 %v868, 0.0
    %v873 = vmax.f32 %v869, 0.0
    %v874 = vmax.f32 %v870, 0.0
    %875 = vst [vmem:[#allocation8] sm:$0xff] %v871
    %876 = vst [vmem:[#allocation8 + $0x8] sm:$0xff] %v872
    %877 = vst [vmem:[#allocation8 + $0x10] sm:$0xff] %v873
    %878 = vst [vmem:[#allocation8 + $0x18] sm:$0xff] %v874
    // Predicated region
    $region30: #{residual_block_lane.1} parent=1 // pred_check
      _
    $region31: #{residual_block_lane.1} parent=1 // pred_check_branch
      %880 = sbr.rel (0) target = $region33
    $region32: #{residual_block_lane.1} parent=1 // pred_region
      %s882 = ssub.s32 512, 512
      %883 = vsyncadd [#allocation4], %s882
      %s884 = sshll.u32 [#allocation8], 4
      %s885 = int_to_ptr.vmem [resolvable:$true] %s884
      %890 = dma.vmem_to_hbm [thread:$0]  %s885, 512, %s4, [#allocation4], 128, 128, 8
    $region33: #{residual_block_lane.1} parent=1 // pred_fallthru
      _
    // Predicated region
    $region34: #{residual_block_lane.1} parent=1 // pred_check
      _
    $region35: #{residual_block_lane.1} parent=1 // pred_check_branch
      %892 = sbr.rel (0) target = $region37
    $region36: #{residual_block_lane.1} parent=1 // pred_region
      %893 = dma.done [#allocation4], 512
    $region37: #{residual_block_lane.1} parent=1 // pred_fallthru
      _
    %894 = vsyncpa [#allocation3], 1
    %895 = vsyncpa [#allocation6], 1
    %896 = vsyncpa [#allocation4], 1

</llo_original>
